<compile_context>
chip_gen: v7x
topology: tpu7x:2x2x1
jax: 0.10.0
libtpu: 0.0.40
codegen_flags: <defaults>
</compile_context>

<pallas_src>
import jax
import jax.numpy as jnp
from jax.experimental import pallas as pl
from jax.experimental.pallas import tpu as pltpu


MAX_BATCH_TILE = 128   # fills the MXU M dim; 256 would spill vregs in the T-loop
CLASS_PAD = 128        # lane-dense padded class dimension (unmasked vst)


def _round_up(x, m):
    return ((x + m - 1) // m) * m


def _choose_batch_tile(batch):
    """Pick a sublane-aligned batch tile.

    Capped at MAX_BATCH_TILE; when the batch is large enough, keep at least two
    grid blocks so dimension_semantics=("parallel",) can shard across the two
    TensorCores of a v7x chip (no-op on v5e/v6e).
    Returns (tile, padded_batch).
    """
    b8 = _round_up(batch, 8)
    tile = min(MAX_BATCH_TILE, b8)
    if b8 >= 16 and b8 < 2 * tile:
        tile = min(tile, _round_up((b8 + 1) // 2, 8))
    b_pad = _round_up(b8, tile)
    return tile, b_pad


def rnn_classify_kernel(xp_ref, whh_ref, wcls_ref, bcls_ref, o_ref):
    """RNN recurrence (input proj + bias pre-fused) + classifier + softmax.

    xp_ref   : (T, Bt, H)  bf16  pre-projected inputs  x_t @ W_ih^T + b  (time-major)
    whh_ref  : (H, H)      f32   W_hh^T
    wcls_ref : (H, Cp)     f32   W_classify^T, zero-padded to Cp=128 lanes
    bcls_ref : (1, Cp)     f32   b_classify, padded lanes filled with -1e30
    o_ref    : (Bt, Cp)    f32   softmax probabilities (padded lanes == 0)
    """
    T = xp_ref.shape[0]
    whh = whh_ref[...]

    # h_t = tanh(x_pre_t + h_{t-1} @ W_hh^T), h_{-1} = 0  (bias folded into x_pre).
    # t = 0 needs no matmul on the critical path.
    h = jnp.tanh(xp_ref[0].astype(jnp.float32))
    # T is small and static -> fully unrolled. For large T switch to
    # lax.fori_loop(..., unroll=True) to bound trace size / vreg live ranges.
    for t in range(1, T):
        h = jnp.tanh(
            xp_ref[t].astype(jnp.float32)
            + jnp.dot(h, whh, preferred_element_type=jnp.float32)
        )

    # Classifier on the last hidden state (lane-dense padded logits).
    logits = (
        jnp.dot(h, wcls_ref[...], preferred_element_type=jnp.float32)
        + bcls_ref[...]
    )

    # Max-shifted softmax; padded lanes have logit ~ -1e30 -> exp == 0.
    m = jnp.max(logits, axis=-1, keepdims=True)
    e = jnp.exp(logits - m)
    denom = jnp.sum(e, axis=-1, keepdims=True)
    # Exact reciprocal so each row sums to 1; off the serial critical path.
    o_ref[...] = e * pl.reciprocal(denom, approx=False)


def init_params(key, vocab_size, vector_dim, hidden_size, sentence_length):
    """Deterministic synthetic parameters matching the nn.Module shapes."""
    k_emb, k_wih, k_whh, k_bih, k_bhh, k_wc, k_bc = jax.random.split(key, 7)
    num_classes = sentence_length + 1
    assert num_classes <= CLASS_PAD, "CLASS_PAD lane padding scheme requires C <= 128"

    embedding = jax.random.normal(k_emb, (vocab_size, vector_dim), jnp.float32) * 0.1
    embedding = embedding.at[0].set(0.0)  # padding_idx=0 (forward values only)

    w_ih = jax.random.normal(k_wih, (hidden_size, vector_dim), jnp.float32) * 0.1
    w_hh = jax.random.normal(k_whh, (hidden_size, hidden_size), jnp.float32) * 0.1
    b_ih = jax.random.normal(k_bih, (hidden_size,), jnp.float32) * 0.1
    b_hh = jax.random.normal(k_bhh, (hidden_size,), jnp.float32) * 0.1

    w_cls = jax.random.normal(k_wc, (num_classes, hidden_size), jnp.float32) * 0.1
    b_cls = jax.random.normal(k_bc, (num_classes,), jnp.float32) * 0.1

    # Fold the input projection AND the per-step RNN bias into the table:
    #   (embedding[x] @ W_ih^T + b_ih + b_hh) == (embedding @ W_ih^T + b)[x]
    # Stored in bf16: the only batch-sized HBM input (the gathered x_pre)
    # inherits the dtype, halving HBM/DMA bytes.
    emb_proj = (jnp.dot(embedding, w_ih.T) + (b_ih + b_hh)).astype(jnp.bfloat16)

    # Lane-dense classifier: pad C -> CLASS_PAD. Padded bias lanes = -1e30 so
    # the padded softmax entries vanish.
    wcls_pad = jnp.zeros((hidden_size, CLASS_PAD), jnp.float32)
    wcls_pad = wcls_pad.at[:, :num_classes].set(w_cls.T)  # (H, Cp)
    bcls_pad = jnp.full((1, CLASS_PAD), -1e30, jnp.float32)
    bcls_pad = bcls_pad.at[:, :num_classes].set(b_cls)

    return {
        # kernel inputs
        "emb_proj": emb_proj,                   # (vocab, H) bf16, bias folded in
        "whh_t": w_hh.T,                        # (H, H)
        "wcls_pad": wcls_pad,                   # (H, Cp)
        "bcls_pad": bcls_pad,                   # (1, Cp)
        "num_classes": num_classes,
        # originals kept for the pure-JAX reference check
        "embedding": embedding,
        "w_ih": w_ih, "w_hh": w_hh, "b_ih": b_ih, "b_hh": b_hh,
        "w_cls": w_cls, "b_cls": b_cls,
    }


def torch_model_forward(x_tokens, params):
    """Equivalent of TorchModel.forward(x) with y=None (returns softmax probs)."""
    # Glue: gather the pre-projected, bias-folded embedding table (bf16), then
    # lay it out time-major so each recurrence step is one contiguous tile load.
    x_pre = jnp.take(params["emb_proj"], x_tokens, axis=0)   # (B, T, H) bf16
    x_pre = jnp.transpose(x_pre, (1, 0, 2))                  # (T, B, H) bf16

    T, B, H = x_pre.shape
    C = params["num_classes"]
    Cp = CLASS_PAD

    Bt, B_pad = _choose_batch_tile(B)
    if B_pad != B:
        x_pre = jnp.pad(x_pre, ((0, 0), (0, B_pad - B), (0, 0)))
    num_blocks = B_pad // Bt

    cost = pl.CostEstimate(
        flops=2 * B_pad * (T - 1) * H * H + 2 * B_pad * H * Cp,
        transcendentals=B_pad * T * H + B_pad * (Cp + 1),
        bytes_accessed=(
            2 * B_pad * T * H              # x_pre (bf16)
            + 4 * (H * H + H * Cp + Cp)    # weights / padded bias (f32)
            + 4 * B_pad * Cp               # output (f32)
        ),
    )

    probs_pad = pl.pallas_call(
        rnn_classify_kernel,
        out_shape=jax.ShapeDtypeStruct((B_pad, Cp), jnp.float32),
        grid=(num_blocks,),
        in_specs=[
            pl.BlockSpec((T, Bt, H), lambda i: (0, i, 0)),   # x_pre: time-major, batch-tiled
            pl.BlockSpec((H, H), lambda i: (0, 0)),          # W_hh^T
            pl.BlockSpec((H, Cp), lambda i: (0, 0)),         # W_cls^T (lane-padded)
            pl.BlockSpec((1, Cp), lambda i: (0, 0)),         # b_cls (lane-padded)
        ],
        out_specs=pl.BlockSpec((Bt, Cp), lambda i: (i, 0)),
        compiler_params=pltpu.CompilerParams(
            dimension_semantics=("parallel",),   # shard batch blocks across TCs (v7x)
        ),
        cost_estimate=cost,
    )(x_pre, params["whh_t"], params["wcls_pad"], params["bcls_pad"])

    # Strip batch padding and the lane padding of the class dimension.
    return probs_pad[:B, :C]


def reference_forward(x_tokens, params):
    """Pure-JAX reference matching the PyTorch forward (y=None path), all f32."""
    x_emb = jnp.take(params["embedding"], x_tokens, axis=0)   # (B, T, D)
    B, T, _ = x_emb.shape
    H = params["w_hh"].shape[0]
    h = jnp.zeros((B, H), jnp.float32)
    for t in range(T):
        h = jnp.tanh(
            x_emb[:, t, :] @ params["w_ih"].T
            + h @ params["w_hh"].T
            + params["b_ih"]
            + params["b_hh"]
        )
    logits = h @ params["w_cls"].T + params["b_cls"]
    return jax.nn.softmax(logits, axis=-1)


if __name__ == "__main__":
    # Small shapes consistent with the module:
    #   vocab=10, vector_dim=16, sentence_length=8, hidden_size=32, batch=2
    VOCAB = 10
    VECTOR_DIM = 16
    SENTENCE_LENGTH = 8
    HIDDEN = 32
    BATCH = 2

    key = jax.random.PRNGKey(0)
    k_params, k_x = jax.random.split(key)

    params = init_params(k_params, VOCAB, VECTOR_DIM, HIDDEN, SENTENCE_LENGTH)
    x_tokens = jax.random.randint(
        k_x, (BATCH, SENTENCE_LENGTH), minval=0, maxval=VOCAB, dtype=jnp.int32
    )

    probs = torch_model_forward(x_tokens, params)
    jax.block_until_ready(probs)

    assert probs.shape == (BATCH, SENTENCE_LENGTH + 1)

    # Numerical check against the f32 unfused pure-JAX reference.
    # (The kernel's x_pre path is bf16 -> loose-ish tolerance.)
    ref = reference_forward(x_tokens, params)
    assert bool(jnp.allclose(probs, ref, atol=1e-2, rtol=1e-2))
    # Exact reciprocal in the softmax -> rows sum to 1.
    assert bool(jnp.allclose(jnp.sum(probs, axis=-1), 1.0, atol=1e-5))

    print("KERNEL_OK")
</pallas_src>

<mosaic_0001>
module attributes {stable_mosaic.version = 11 : i64} {
  func.func @rnn_classify_kernel(%arg0: i32, %arg1: memref<8x8x32xbf16, #tpu.memory_space<vmem>>, %arg2: memref<32x32xf32, #tpu.memory_space<vmem>>, %arg3: memref<32x128xf32, #tpu.memory_space<vmem>>, %arg4: memref<1x128xf32, #tpu.memory_space<vmem>>, %arg5: memref<8x128xf32, #tpu.memory_space<vmem>>) attributes {dimension_semantics = [#tpu.dimension_semantics<parallel>], iteration_bounds = array<i64: 1>, scalar_prefetch = 0 : i64, scratch_operands = 0 : i64, tpu.core_type = #tpu.core_type<tc>, window_params = [{transform_indices = @transform_0, window_bounds = array<i64: 8, 8, 32>}, {pipeline_mode = #tpu.pipeline_mode<synchronous>, transform_indices = @transform_1, window_bounds = array<i64: 32, 32>}, {pipeline_mode = #tpu.pipeline_mode<synchronous>, transform_indices = @transform_2, window_bounds = array<i64: 32, 128>}, {pipeline_mode = #tpu.pipeline_mode<synchronous>, transform_indices = @transform_3, window_bounds = array<i64: 1, 128>}, {transform_indices = @transform_4, window_bounds = array<i64: 8, 128>}]} {
    %c0 = arith.constant 0 : index
    %c0_0 = arith.constant 0 : index
    %0 = vector.load %arg2[%c0, %c0_0] : memref<32x32xf32, #tpu.memory_space<vmem>>, vector<32x32xf32>
    %c0_1 = arith.constant 0 : index
    %c0_2 = arith.constant 0 : index
    %c0_3 = arith.constant 0 : index
    %1 = vector.load %arg1[%c0_1, %c0_2, %c0_3] : memref<8x8x32xbf16, #tpu.memory_space<vmem>>, vector<1x8x32xbf16>
    %2 = vector.shape_cast %1 : vector<1x8x32xbf16> to vector<8x32xbf16>
    %3 = arith.extf %2 : vector<8x32xbf16> to vector<8x32xf32>
    %4 = math.tanh %3 : vector<8x32xf32>
    %c1 = arith.constant 1 : index
    %c0_4 = arith.constant 0 : index
    %c0_5 = arith.constant 0 : index
    %5 = vector.load %arg1[%c1, %c0_4, %c0_5] : memref<8x8x32xbf16, #tpu.memory_space<vmem>>, vector<1x8x32xbf16>
    %6 = vector.shape_cast %5 : vector<1x8x32xbf16> to vector<8x32xbf16>
    %7 = arith.extf %6 : vector<8x32xbf16> to vector<8x32xf32>
    %cst = arith.constant dense<0.000000e+00> : vector<8x32xf32>
    %8 = tpu.matmul %4, %0, %cst {dimension_numbers = #tpu.dot_dimension_numbers<[1], [0], [0], [1], [0, 0, 1, 1], [], []>} : vector<8x32xf32>, vector<32x32xf32>, vector<8x32xf32> -> vector<8x32xf32>
    %9 = arith.addf %7, %8 : vector<8x32xf32>
    %10 = math.tanh %9 : vector<8x32xf32>
    %c2 = arith.constant 2 : index
    %c0_6 = arith.constant 0 : index
    %c0_7 = arith.constant 0 : index
    %11 = vector.load %arg1[%c2, %c0_6, %c0_7] : memref<8x8x32xbf16, #tpu.memory_space<vmem>>, vector<1x8x32xbf16>
    %12 = vector.shape_cast %11 : vector<1x8x32xbf16> to vector<8x32xbf16>
    %13 = arith.extf %12 : vector<8x32xbf16> to vector<8x32xf32>
    %cst_8 = arith.constant dense<0.000000e+00> : vector<8x32xf32>
    %14 = tpu.matmul %10, %0, %cst_8 {dimension_numbers = #tpu.dot_dimension_numbers<[1], [0], [0], [1], [0, 0, 1, 1], [], []>} : vector<8x32xf32>, vector<32x32xf32>, vector<8x32xf32> -> vector<8x32xf32>
    %15 = arith.addf %13, %14 : vector<8x32xf32>
    %16 = math.tanh %15 : vector<8x32xf32>
    %c3 = arith.constant 3 : index
    %c0_9 = arith.constant 0 : index
    %c0_10 = arith.constant 0 : index
    %17 = vector.load %arg1[%c3, %c0_9, %c0_10] : memref<8x8x32xbf16, #tpu.memory_space<vmem>>, vector<1x8x32xbf16>
    %18 = vector.shape_cast %17 : vector<1x8x32xbf16> to vector<8x32xbf16>
    %19 = arith.extf %18 : vector<8x32xbf16> to vector<8x32xf32>
    %cst_11 = arith.constant dense<0.000000e+00> : vector<8x32xf32>
    %20 = tpu.matmul %16, %0, %cst_11 {dimension_numbers = #tpu.dot_dimension_numbers<[1], [0], [0], [1], [0, 0, 1, 1], [], []>} : vector<8x32xf32>, vector<32x32xf32>, vector<8x32xf32> -> vector<8x32xf32>
    %21 = arith.addf %19, %20 : vector<8x32xf32>
    %22 = math.tanh %21 : vector<8x32xf32>
    %c4 = arith.constant 4 : index
    %c0_12 = arith.constant 0 : index
    %c0_13 = arith.constant 0 : index
    %23 = vector.load %arg1[%c4, %c0_12, %c0_13] : memref<8x8x32xbf16, #tpu.memory_space<vmem>>, vector<1x8x32xbf16>
    %24 = vector.shape_cast %23 : vector<1x8x32xbf16> to vector<8x32xbf16>
    %25 = arith.extf %24 : vector<8x32xbf16> to vector<8x32xf32>
    %cst_14 = arith.constant dense<0.000000e+00> : vector<8x32xf32>
    %26 = tpu.matmul %22, %0, %cst_14 {dimension_numbers = #tpu.dot_dimension_numbers<[1], [0], [0], [1], [0, 0, 1, 1], [], []>} : vector<8x32xf32>, vector<32x32xf32>, vector<8x32xf32> -> vector<8x32xf32>
    %27 = arith.addf %25, %26 : vector<8x32xf32>
    %28 = math.tanh %27 : vector<8x32xf32>
    %c5 = arith.constant 5 : index
    %c0_15 = arith.constant 0 : index
    %c0_16 = arith.constant 0 : index
    %29 = vector.load %arg1[%c5, %c0_15, %c0_16] : memref<8x8x32xbf16, #tpu.memory_space<vmem>>, vector<1x8x32xbf16>
    %30 = vector.shape_cast %29 : vector<1x8x32xbf16> to vector<8x32xbf16>
    %31 = arith.extf %30 : vector<8x32xbf16> to vector<8x32xf32>
    %cst_17 = arith.constant dense<0.000000e+00> : vector<8x32xf32>
    %32 = tpu.matmul %28, %0, %cst_17 {dimension_numbers = #tpu.dot_dimension_numbers<[1], [0], [0], [1], [0, 0, 1, 1], [], []>} : vector<8x32xf32>, vector<32x32xf32>, vector<8x32xf32> -> vector<8x32xf32>
    %33 = arith.addf %31, %32 : vector<8x32xf32>
    %34 = math.tanh %33 : vector<8x32xf32>
    %c6 = arith.constant 6 : index
    %c0_18 = arith.constant 0 : index
    %c0_19 = arith.constant 0 : index
    %35 = vector.load %arg1[%c6, %c0_18, %c0_19] : memref<8x8x32xbf16, #tpu.memory_space<vmem>>, vector<1x8x32xbf16>
    %36 = vector.shape_cast %35 : vector<1x8x32xbf16> to vector<8x32xbf16>
    %37 = arith.extf %36 : vector<8x32xbf16> to vector<8x32xf32>
    %cst_20 = arith.constant dense<0.000000e+00> : vector<8x32xf32>
    %38 = tpu.matmul %34, %0, %cst_20 {dimension_numbers = #tpu.dot_dimension_numbers<[1], [0], [0], [1], [0, 0, 1, 1], [], []>} : vector<8x32xf32>, vector<32x32xf32>, vector<8x32xf32> -> vector<8x32xf32>
    %39 = arith.addf %37, %38 : vector<8x32xf32>
    %40 = math.tanh %39 : vector<8x32xf32>
    %c7 = arith.constant 7 : index
    %c0_21 = arith.constant 0 : index
    %c0_22 = arith.constant 0 : index
    %41 = vector.load %arg1[%c7, %c0_21, %c0_22] : memref<8x8x32xbf16, #tpu.memory_space<vmem>>, vector<1x8x32xbf16>
    %42 = vector.shape_cast %41 : vector<1x8x32xbf16> to vector<8x32xbf16>
    %43 = arith.extf %42 : vector<8x32xbf16> to vector<8x32xf32>
    %cst_23 = arith.constant dense<0.000000e+00> : vector<8x32xf32>
    %44 = tpu.matmul %40, %0, %cst_23 {dimension_numbers = #tpu.dot_dimension_numbers<[1], [0], [0], [1], [0, 0, 1, 1], [], []>} : vector<8x32xf32>, vector<32x32xf32>, vector<8x32xf32> -> vector<8x32xf32>
    %45 = arith.addf %43, %44 : vector<8x32xf32>
    %46 = math.tanh %45 : vector<8x32xf32>
    %c0_24 = arith.constant 0 : index
    %c0_25 = arith.constant 0 : index
    %47 = vector.load %arg3[%c0_24, %c0_25] : memref<32x128xf32, #tpu.memory_space<vmem>>, vector<32x128xf32>
    %cst_26 = arith.constant dense<0.000000e+00> : vector<8x128xf32>
    %48 = tpu.matmul %46, %47, %cst_26 {dimension_numbers = #tpu.dot_dimension_numbers<[1], [0], [0], [1], [0, 0, 1, 1], [], []>} : vector<8x32xf32>, vector<32x128xf32>, vector<8x128xf32> -> vector<8x128xf32>
    %c0_27 = arith.constant 0 : index
    %c0_28 = arith.constant 0 : index
    %49 = vector.load %arg4[%c0_27, %c0_28] : memref<1x128xf32, #tpu.memory_space<vmem>>, vector<1x128xf32>
    %50 = vector.broadcast %49 : vector<1x128xf32> to vector<8x128xf32>
    %51 = arith.addf %48, %50 : vector<8x128xf32>
    %cst_29 = arith.constant dense<0xFF800000> : vector<8xf32>
    %52 = vector.multi_reduction <maximumf>, %51, %cst_29 [1] : vector<8x128xf32> to vector<8xf32>
    %53 = vector.shape_cast %52 : vector<8xf32> to vector<8x1xf32>
    %54 = vector.broadcast %53 : vector<8x1xf32> to vector<8x128xf32>
    %55 = arith.subf %51, %54 : vector<8x128xf32>
    %56 = math.exp %55 : vector<8x128xf32>
    %cst_30 = arith.constant dense<0.000000e+00> : vector<8xf32>
    %57 = vector.multi_reduction <add>, %56, %cst_30 [1] : vector<8x128xf32> to vector<8xf32>
    %58 = vector.shape_cast %57 : vector<8xf32> to vector<8x1xf32>
    %59 = tpu.reciprocal %58 : vector<8x1xf32> -> vector<8x1xf32>
    %60 = vector.broadcast %59 : vector<8x1xf32> to vector<8x128xf32>
    %61 = arith.mulf %56, %60 : vector<8x128xf32>
    %c0_31 = arith.constant 0 : index
    %c0_32 = arith.constant 0 : index
    %62 = vector.load %arg5[%c0_31, %c0_32] : memref<8x128xf32, #tpu.memory_space<vmem>>, vector<8x128xf32>
    tpu.vector_store %arg5[%c0_31, %c0_32], %61 {strides = array<i32>} : memref<8x128xf32, #tpu.memory_space<vmem>>, vector<8x128xf32>,
    return
  }
  func.func @transform_0(%arg0: i32) -> (i32, i32, i32) {
    %c0_i32 = arith.constant 0 : i32
    %c0_i32_0 = arith.constant 0 : i32
    %c0_i32_1 = arith.constant 0 : i32
    return %c0_i32, %arg0, %c0_i32_0 : i32, i32, i32
  }
  func.func @transform_1(%arg0: i32) -> (i32, i32) {
    %c0_i32 = arith.constant 0 : i32
    %c0_i32_0 = arith.constant 0 : i32
    %c0_i32_1 = arith.constant 0 : i32
    return %c0_i32, %c0_i32_0 : i32, i32
  }
  func.func @transform_2(%arg0: i32) -> (i32, i32) {
    %c0_i32 = arith.constant 0 : i32
    %c0_i32_0 = arith.constant 0 : i32
    %c0_i32_1 = arith.constant 0 : i32
    return %c0_i32, %c0_i32_0 : i32, i32
  }
  func.func @transform_3(%arg0: i32) -> (i32, i32) {
    %c0_i32 = arith.constant 0 : i32
    %c0_i32_0 = arith.constant 0 : i32
    %c0_i32_1 = arith.constant 0 : i32
    return %c0_i32, %c0_i32_0 : i32, i32
  }
  func.func @transform_4(%arg0: i32) -> (i32, i32) {
    %c0_i32 = arith.constant 0 : i32
    %c0_i32_0 = arith.constant 0 : i32
    return %arg0, %c0_i32 : i32, i32
  }
}

</mosaic_0001>

<llo_original>
// kernel: tpu_custom_call.1
$region0: #{tpu_custom_call.1}
  #allocation0 [shape = 'u32[]', space=smem, size = 0x4, offset = 0x4, fixed_abs, tag = 'smem constant byte address 0x4 - core index']
  #allocation1 [shape = 'u32[144,128]{1,0:T(1,128)}', space=vmem, size = 0x12000, scoped, tag = 'internal scratch']
  %s0 = inlined_call_operand.hbm [shape: bf16[8,8,32], index: 0, kind: input, shape index: {}]
  %s1 = inlined_call_operand.hbm [shape: f32[32,32], index: 1, kind: input, shape index: {}]
  %s2 = inlined_call_operand.hbm [shape: f32[32,128], index: 2, kind: input, shape index: {}]
  %s3 = inlined_call_operand.vmem [shape: f32[1,128], index: 3, kind: input, shape index: {}]
  %s4 = inlined_call_operand.hbm [shape: f32[8,128], index: 4, kind: output, shape index: {}]
  %s5 = sld [smem:[#allocation0]]
  $region38: #{tpu_custom_call.1} parent=0
    _
  %s7 = ssub.s32 1, %s5
  %s8 = scalar_select 0, %s7, %s5
  $region1: #{tpu_custom_call.1} parent=0
    #allocation2 [shape = 'u8[16384]{0}', space=vmem, size = 0x4000, scoped, tag = 'input window, operand 0, single buffered']
    #allocation3 [shape = 's32[1]{0}', space=sflag, size = 0x4, scoped, tag = 'scoped memory for tpu_custom_call.1']
    #allocation4 [shape = 's32[1]{0}', space=sflag, size = 0x4, scoped, tag = 'scoped memory for tpu_custom_call.1']
    #allocation5 [shape = 'u8[16384]{0}', space=vmem, size = 0x4000, scoped, tag = 'input window, operand 1, single buffered']
    #allocation6 [shape = 's32[1]{0}', space=sflag, size = 0x4, scoped, tag = 'scoped memory for tpu_custom_call.1']
    #allocation7 [shape = 'u8[16384]{0}', space=vmem, size = 0x4000, scoped, tag = 'input window, operand 2, single buffered']
    #allocation8 [shape = 'u8[4096]{0}', space=vmem, size = 0x1000, scoped, tag = 'output window, operand 0, single buffered']
    %9 = vsyncpa [#allocation3], 0
    %10 = vsyncpa [#allocation6], 0
    %11 = vsyncpa [#allocation4], 0
    // Predicated region
    $region2: #{tpu_custom_call.1} parent=1 // pred_check
      _
    $region3: #{tpu_custom_call.1} parent=1 // pred_check_branch
      %13 = sbr.rel (0) target = $region5
    $region4: #{tpu_custom_call.1} parent=1 // pred_region
      %s15 = ssub.s32 512, 512
      %16 = vsyncadd [#allocation3], %s15
      %s17 = sshll.u32 [#allocation2], 4
      %s18 = int_to_ptr.vmem [resolvable:$true] %s17
      %23 = dma.hbm_to_vmem [thread:$0]  %s0, 512, %s18, [#allocation3], 64, 64, 4
    $region5: #{tpu_custom_call.1} parent=1 // pred_fallthru
      _
    // Predicated region
    $region6: #{tpu_custom_call.1} parent=1 // pred_check
      _
    $region7: #{tpu_custom_call.1} parent=1 // pred_check_branch
      %25 = sbr.rel (0) target = $region9
    $region8: #{tpu_custom_call.1} parent=1 // pred_region
      %s27 = ssub.s32 512, 512
      %28 = vsyncadd [#allocation6], %s27
      %s29 = sshll.u32 [#allocation5], 4
      %s30 = int_to_ptr.vmem [resolvable:$true] %s29
      %35 = dma.hbm_to_vmem [thread:$0]  %s1, 512, %s30, [#allocation6], 128, 128, 8
    $region9: #{tpu_custom_call.1} parent=1 // pred_fallthru
      _
    // Predicated region
    $region10: #{tpu_custom_call.1} parent=1 // pred_check
      _
    $region11: #{tpu_custom_call.1} parent=1 // pred_check_branch
      %37 = sbr.rel (0) target = $region13
    $region12: #{tpu_custom_call.1} parent=1 // pred_region
      %s39 = ssub.s32 512, 512
      %40 = vsyncadd [#allocation6], %s39
      %s41 = sshll.u32 [#allocation7], 4
      %s42 = int_to_ptr.vmem [resolvable:$true] %s41
      %47 = dma.hbm_to_vmem [thread:$0]  %s2, 512, %s42, [#allocation6], 128, 128, 8
    $region13: #{tpu_custom_call.1} parent=1 // pred_fallthru
      _
    // Predicated region
    $region14: #{tpu_custom_call.1} parent=1 // pred_check
      _
    $region15: #{tpu_custom_call.1} parent=1 // pred_check_branch
      %49 = sbr.rel (0) target = $region17
    $region16: #{tpu_custom_call.1} parent=1 // pred_region
      _
    $region17: #{tpu_custom_call.1} parent=1 // pred_fallthru
      _
    // Predicated region
    $region18: #{tpu_custom_call.1} parent=1 // pred_check
      _
    $region19: #{tpu_custom_call.1} parent=1 // pred_check_branch
      %51 = sbr.rel (0) target = $region21
    $region20: #{tpu_custom_call.1} parent=1 // pred_region
      %52 = dma.done [#allocation3], 512
    $region21: #{tpu_custom_call.1} parent=1 // pred_fallthru
      _
    // Predicated region
    $region22: #{tpu_custom_call.1} parent=1 // pred_check
      _
    $region23: #{tpu_custom_call.1} parent=1 // pred_check_branch
      %54 = sbr.rel (0) target = $region25
    $region24: #{tpu_custom_call.1} parent=1 // pred_region
      %55 = dma.done [#allocation6], 512
    $region25: #{tpu_custom_call.1} parent=1 // pred_fallthru
      _
    // Predicated region
    $region26: #{tpu_custom_call.1} parent=1 // pred_check
      _
    $region27: #{tpu_custom_call.1} parent=1 // pred_check_branch
      %57 = sbr.rel (0) target = $region29
    $region28: #{tpu_custom_call.1} parent=1 // pred_region
      %58 = dma.done [#allocation6], 512
    $region29: #{tpu_custom_call.1} parent=1 // pred_fallthru
      _
    %v59 = vld [vmem:[#allocation5] sm:$0xff]
    %v60 = vld [vmem:[#allocation5 + $0x8] sm:$0xff]
    %v61 = vld [vmem:[#allocation5 + $0x10] sm:$0xff]
    %v62 = vld [vmem:[#allocation5 + $0x18] sm:$0xff]
    %v63 = vld [vmem:[#allocation2] sm:$0xf]
    %v64 = vunpack.c.l.bf16 %v63
    %v65 = vtanh.pop %v64
    %s66 = scalar_lea.vmem [#allocation2], 4
    %v67 = vld [vmem:[%s66] sm:$0xf]
    %v68 = vunpack.c.l.bf16 %v67
    %vm69 = vcmask 261120
    %v71 = vsel %vm69, %v65, 0
    %73 = vmatprep.subr.mxu0 0.0
    %74 = vmatpush1.msra.mxu0 %v59
    %75 = vmatprep.subr.mxu0 0.0
    %76 = vmatpush1.msra.mxu0 %v60
    %77 = vmatprep.subr.mxu0 0.0
    %78 = vmatpush1.msra.mxu0 %v61
    %79 = vmatprep.subr.mxu0 0.0
    %80 = vmatpush1.msra.mxu0 %v62
    %81 = vmatprep.subr.mxu0 0.0
    %82 = vmatpush1.msra.mxu0 0.0
    %83 = vmatprep.subr.mxu0 0.0
    %84 = vmatpush1.msra.mxu0 0.0
    %85 = vmatprep.subr.mxu0 0.0
    %86 = vmatpush1.msra.mxu0 0.0
    %87 = vmatprep.subr.mxu0 0.0
    %88 = vmatpush1.msra.mxu0 0.0
    %89 = vmatprep.subr.mxu0 0.0
    %90 = vmatpush1.msra.mxu0 0.0
    %91 = vmatprep.subr.mxu0 0.0
    %92 = vmatpush1.msra.mxu0 0.0
    %93 = vmatprep.subr.mxu0 0.0
    %94 = vmatpush1.msra.mxu0 0.0
    %95 = vmatprep.subr.mxu0 0.0
    %96 = vmatpush1.msra.mxu0 0.0
    %97 = vmatprep.subr.mxu0 0.0
    %98 = vmatpush1.msra.mxu0 0.0
    %99 = vmatprep.subr.mxu0 0.0
    %100 = vmatpush1.msra.mxu0 0.0
    %101 = vmatprep.subr.mxu0 0.0
    %102 = vmatpush1.msra.mxu0 0.0
    %103 = vmatprep.subr.mxu0 0.0
    %104 = vmatpush1.msra.mxu0 0.0
    %105 = vmatprep.subr.mxu0 0.0
    %106 = vmatpush1.msra.mxu0 0.0
    %107 = vmatprep.subr.mxu0 0.0
    %108 = vmatpush1.msra.mxu0 0.0
    %109 = vmatprep.subr.mxu0 0.0
    %110 = vmatpush1.msra.mxu0 0.0
    %111 = vmatprep.subr.mxu0 0.0
    %112 = vmatpush1.msra.mxu0 0.0
    %113 = vmatprep.subr.mxu0 0.0
    %114 = vmatpush1.msra.mxu0 0.0
    %115 = vmatprep.subr.mxu0 0.0
    %116 = vmatpush1.msra.mxu0 0.0
    %117 = vmatprep.subr.mxu0 0.0
    %118 = vmatpush1.msra.mxu0 0.0
    %119 = vmatprep.subr.mxu0 0.0
    %120 = vmatpush1.msra.mxu0 0.0
    %121 = vmatprep.subr.mxu0 0.0
    %122 = vmatpush1.msra.mxu0 0.0
    %123 = vmatprep.subr.mxu0 0.0
    %124 = vmatpush1.msra.mxu0 0.0
    %125 = vmatprep.subr.mxu0 0.0
    %126 = vmatpush1.msra.mxu0 0.0
    %127 = vmatprep.subr.mxu0 0.0
    %128 = vmatpush1.msra.mxu0 0.0
    %129 = vmatprep.subr.mxu0 0.0
    %130 = vmatpush1.msra.mxu0 0.0
    %131 = vmatprep.subr.mxu0 0.0
    %132 = vmatpush1.msra.mxu0 0.0
    %133 = vmatprep.subr.mxu0 0.0
    %134 = vmatpush1.msra.mxu0 0.0
    %135 = vmatprep.subr.mxu0 0.0
    %136 = vmatpush1.msra.mxu0 0.0
    %137 = vmatprep.mubr.f32.mxu0 0.0
    %138 = vmatmul.mubr.f32.gmra.mrb[0].mxu0 %v71
    %v139 = vpop.f32.mrb[0].mxu0
    %v140 = vadd.f32 0.0, %v139
    %v141 = vpop.f32.mrb[0].mxu0
    %142 = vdwg.mxu0
    %v143 = vadd.f32 %v68, %v140
    %v144 = vtanh.pop %v143
    %s145 = scalar_lea.vmem [#allocation2], 8
    %v146 = vld [vmem:[%s145] sm:$0xf]
    %v147 = vunpack.c.l.bf16 %v146
    %v149 = vsel %vm69, %v144, 0
    %151 = vmatprep.subr.mxu0 0.0
    %152 = vmatpush1.msra.mxu0 %v59
    %153 = vmatprep.subr.mxu0 0.0
    %154 = vmatpush1.msra.mxu0 %v60
    %155 = vmatprep.subr.mxu0 0.0
    %156 = vmatpush1.msra.mxu0 %v61
    %157 = vmatprep.subr.mxu0 0.0
    %158 = vmatpush1.msra.mxu0 %v62
    %159 = vmatprep.subr.mxu0 0.0
    %160 = vmatpush1.msra.mxu0 0.0
    %161 = vmatprep.subr.mxu0 0.0
    %162 = vmatpush1.msra.mxu0 0.0
    %163 = vmatprep.subr.mxu0 0.0
    %164 = vmatpush1.msra.mxu0 0.0
    %165 = vmatprep.subr.mxu0 0.0
    %166 = vmatpush1.msra.mxu0 0.0
    %167 = vmatprep.subr.mxu0 0.0
    %168 = vmatpush1.msra.mxu0 0.0
    %169 = vmatprep.subr.mxu0 0.0
    %170 = vmatpush1.msra.mxu0 0.0
    %171 = vmatprep.subr.mxu0 0.0
    %172 = vmatpush1.msra.mxu0 0.0
    %173 = vmatprep.subr.mxu0 0.0
    %174 = vmatpush1.msra.mxu0 0.0
    %175 = vmatprep.subr.mxu0 0.0
    %176 = vmatpush1.msra.mxu0 0.0
    %177 = vmatprep.subr.mxu0 0.0
    %178 = vmatpush1.msra.mxu0 0.0
    %179 = vmatprep.subr.mxu0 0.0
    %180 = vmatpush1.msra.mxu0 0.0
    %181 = vmatprep.subr.mxu0 0.0
    %182 = vmatpush1.msra.mxu0 0.0
    %183 = vmatprep.subr.mxu0 0.0
    %184 = vmatpush1.msra.mxu0 0.0
    %185 = vmatprep.subr.mxu0 0.0
    %186 = vmatpush1.msra.mxu0 0.0
    %187 = vmatprep.subr.mxu0 0.0
    %188 = vmatpush1.msra.mxu0 0.0
    %189 = vmatprep.subr.mxu0 0.0
    %190 = vmatpush1.msra.mxu0 0.0
    %191 = vmatprep.subr.mxu0 0.0
    %192 = vmatpush1.msra.mxu0 0.0
    %193 = vmatprep.subr.mxu0 0.0
    %194 = vmatpush1.msra.mxu0 0.0
    %195 = vmatprep.subr.mxu0 0.0
    %196 = vmatpush1.msra.mxu0 0.0
    %197 = vmatprep.subr.mxu0 0.0
    %198 = vmatpush1.msra.mxu0 0.0
    %199 = vmatprep.subr.mxu0 0.0
    %200 = vmatpush1.msra.mxu0 0.0
    %201 = vmatprep.subr.mxu0 0.0
    %202 = vmatpush1.msra.mxu0 0.0
    %203 = vmatprep.subr.mxu0 0.0
    %204 = vmatpush1.msra.mxu0 0.0
    %205 = vmatprep.subr.mxu0 0.0
    %206 = vmatpush1.msra.mxu0 0.0
    %207 = vmatprep.subr.mxu0 0.0
    %208 = vmatpush1.msra.mxu0 0.0
    %209 = vmatprep.subr.mxu0 0.0
    %210 = vmatpush1.msra.mxu0 0.0
    %211 = vmatprep.subr.mxu0 0.0
    %212 = vmatpush1.msra.mxu0 0.0
    %213 = vmatprep.subr.mxu0 0.0
    %214 = vmatpush1.msra.mxu0 0.0
    %215 = vmatprep.mubr.f32.mxu0 0.0
    %216 = vmatmul.mubr.f32.gmra.mrb[0].mxu0 %v149
    %v217 = vpop.f32.mrb[0].mxu0
    %v218 = vadd.f32 0.0, %v217
    %v219 = vpop.f32.mrb[0].mxu0
    %220 = vdwg.mxu0
    %v221 = vadd.f32 %v147, %v218
    %v222 = vtanh.pop %v221
    %s223 = scalar_lea.vmem [#allocation2], 12
    %v224 = vld [vmem:[%s223] sm:$0xf]
    %v225 = vunpack.c.l.bf16 %v224
    %v227 = vsel %vm69, %v222, 0
    %229 = vmatprep.subr.mxu0 0.0
    %230 = vmatpush1.msra.mxu0 %v59
    %231 = vmatprep.subr.mxu0 0.0
    %232 = vmatpush1.msra.mxu0 %v60
    %233 = vmatprep.subr.mxu0 0.0
    %234 = vmatpush1.msra.mxu0 %v61
    %235 = vmatprep.subr.mxu0 0.0
    %236 = vmatpush1.msra.mxu0 %v62
    %237 = vmatprep.subr.mxu0 0.0
    %238 = vmatpush1.msra.mxu0 0.0
    %239 = vmatprep.subr.mxu0 0.0
    %240 = vmatpush1.msra.mxu0 0.0
    %241 = vmatprep.subr.mxu0 0.0
    %242 = vmatpush1.msra.mxu0 0.0
    %243 = vmatprep.subr.mxu0 0.0
    %244 = vmatpush1.msra.mxu0 0.0
    %245 = vmatprep.subr.mxu0 0.0
    %246 = vmatpush1.msra.mxu0 0.0
    %247 = vmatprep.subr.mxu0 0.0
    %248 = vmatpush1.msra.mxu0 0.0
    %249 = vmatprep.subr.mxu0 0.0
    %250 = vmatpush1.msra.mxu0 0.0
    %251 = vmatprep.subr.mxu0 0.0
    %252 = vmatpush1.msra.mxu0 0.0
    %253 = vmatprep.subr.mxu0 0.0
    %254 = vmatpush1.msra.mxu0 0.0
    %255 = vmatprep.subr.mxu0 0.0
    %256 = vmatpush1.msra.mxu0 0.0
    %257 = vmatprep.subr.mxu0 0.0
    %258 = vmatpush1.msra.mxu0 0.0
    %259 = vmatprep.subr.mxu0 0.0
    %260 = vmatpush1.msra.mxu0 0.0
    %261 = vmatprep.subr.mxu0 0.0
    %262 = vmatpush1.msra.mxu0 0.0
    %263 = vmatprep.subr.mxu0 0.0
    %264 = vmatpush1.msra.mxu0 0.0
    %265 = vmatprep.subr.mxu0 0.0
    %266 = vmatpush1.msra.mxu0 0.0
    %267 = vmatprep.subr.mxu0 0.0
    %268 = vmatpush1.msra.mxu0 0.0
    %269 = vmatprep.subr.mxu0 0.0
    %270 = vmatpush1.msra.mxu0 0.0
    %271 = vmatprep.subr.mxu0 0.0
    %272 = vmatpush1.msra.mxu0 0.0
    %273 = vmatprep.subr.mxu0 0.0
    %274 = vmatpush1.msra.mxu0 0.0
    %275 = vmatprep.subr.mxu0 0.0
    %276 = vmatpush1.msra.mxu0 0.0
    %277 = vmatprep.subr.mxu0 0.0
    %278 = vmatpush1.msra.mxu0 0.0
    %279 = vmatprep.subr.mxu0 0.0
    %280 = vmatpush1.msra.mxu0 0.0
    %281 = vmatprep.subr.mxu0 0.0
    %282 = vmatpush1.msra.mxu0 0.0
    %283 = vmatprep.subr.mxu0 0.0
    %284 = vmatpush1.msra.mxu0 0.0
    %285 = vmatprep.subr.mxu0 0.0
    %286 = vmatpush1.msra.mxu0 0.0
    %287 = vmatprep.subr.mxu0 0.0
    %288 = vmatpush1.msra.mxu0 0.0
    %289 = vmatprep.subr.mxu0 0.0
    %290 = vmatpush1.msra.mxu0 0.0
    %291 = vmatprep.subr.mxu0 0.0
    %292 = vmatpush1.msra.mxu0 0.0
    %293 = vmatprep.mubr.f32.mxu0 0.0
    %294 = vmatmul.mubr.f32.gmra.mrb[0].mxu0 %v227
    %v295 = vpop.f32.mrb[0].mxu0
    %v296 = vadd.f32 0.0, %v295
    %v297 = vpop.f32.mrb[0].mxu0
    %298 = vdwg.mxu0
    %v299 = vadd.f32 %v225, %v296
    %v300 = vtanh.pop %v299
    %s301 = scalar_lea.vmem [#allocation2], 16
    %v302 = vld [vmem:[%s301] sm:$0xf]
    %v303 = vunpack.c.l.bf16 %v302
    %v305 = vsel %vm69, %v300, 0
    %307 = vmatprep.subr.mxu0 0.0
    %308 = vmatpush1.msra.mxu0 %v59
    %309 = vmatprep.subr.mxu0 0.0
    %310 = vmatpush1.msra.mxu0 %v60
    %311 = vmatprep.subr.mxu0 0.0
    %312 = vmatpush1.msra.mxu0 %v61
    %313 = vmatprep.subr.mxu0 0.0
    %314 = vmatpush1.msra.mxu0 %v62
    %315 = vmatprep.subr.mxu0 0.0
    %316 = vmatpush1.msra.mxu0 0.0
    %317 = vmatprep.subr.mxu0 0.0
    %318 = vmatpush1.msra.mxu0 0.0
    %319 = vmatprep.subr.mxu0 0.0
    %320 = vmatpush1.msra.mxu0 0.0
    %321 = vmatprep.subr.mxu0 0.0
    %322 = vmatpush1.msra.mxu0 0.0
    %323 = vmatprep.subr.mxu0 0.0
    %324 = vmatpush1.msra.mxu0 0.0
    %325 = vmatprep.subr.mxu0 0.0
    %326 = vmatpush1.msra.mxu0 0.0
    %327 = vmatprep.subr.mxu0 0.0
    %328 = vmatpush1.msra.mxu0 0.0
    %329 = vmatprep.subr.mxu0 0.0
    %330 = vmatpush1.msra.mxu0 0.0
    %331 = vmatprep.subr.mxu0 0.0
    %332 = vmatpush1.msra.mxu0 0.0
    %333 = vmatprep.subr.mxu0 0.0
    %334 = vmatpush1.msra.mxu0 0.0
    %335 = vmatprep.subr.mxu0 0.0
    %336 = vmatpush1.msra.mxu0 0.0
    %337 = vmatprep.subr.mxu0 0.0
    %338 = vmatpush1.msra.mxu0 0.0
    %339 = vmatprep.subr.mxu0 0.0
    %340 = vmatpush1.msra.mxu0 0.0
    %341 = vmatprep.subr.mxu0 0.0
    %342 = vmatpush1.msra.mxu0 0.0
    %343 = vmatprep.subr.mxu0 0.0
    %344 = vmatpush1.msra.mxu0 0.0
    %345 = vmatprep.subr.mxu0 0.0
    %346 = vmatpush1.msra.mxu0 0.0
    %347 = vmatprep.subr.mxu0 0.0
    %348 = vmatpush1.msra.mxu0 0.0
    %349 = vmatprep.subr.mxu0 0.0
    %350 = vmatpush1.msra.mxu0 0.0
    %351 = vmatprep.subr.mxu0 0.0
    %352 = vmatpush1.msra.mxu0 0.0
    %353 = vmatprep.subr.mxu0 0.0
    %354 = vmatpush1.msra.mxu0 0.0
    %355 = vmatprep.subr.mxu0 0.0
    %356 = vmatpush1.msra.mxu0 0.0
    %357 = vmatprep.subr.mxu0 0.0
    %358 = vmatpush1.msra.mxu0 0.0
    %359 = vmatprep.subr.mxu0 0.0
    %360 = vmatpush1.msra.mxu0 0.0
    %361 = vmatprep.subr.mxu0 0.0
    %362 = vmatpush1.msra.mxu0 0.0
    %363 = vmatprep.subr.mxu0 0.0
    %364 = vmatpush1.msra.mxu0 0.0
    %365 = vmatprep.subr.mxu0 0.0
    %366 = vmatpush1.msra.mxu0 0.0
    %367 = vmatprep.subr.mxu0 0.0
    %368 = vmatpush1.msra.mxu0 0.0
    %369 = vmatprep.subr.mxu0 0.0
    %370 = vmatpush1.msra.mxu0 0.0
    %371 = vmatprep.mubr.f32.mxu0 0.0
    %372 = vmatmul.mubr.f32.gmra.mrb[0].mxu0 %v305
    %v373 = vpop.f32.mrb[0].mxu0
    %v374 = vadd.f32 0.0, %v373
    %v375 = vpop.f32.mrb[0].mxu0
    %376 = vdwg.mxu0
    %v377 = vadd.f32 %v303, %v374
    %v378 = vtanh.pop %v377
    %s379 = scalar_lea.vmem [#allocation2], 20
    %v380 = vld [vmem:[%s379] sm:$0xf]
    %v381 = vunpack.c.l.bf16 %v380
    %v383 = vsel %vm69, %v378, 0
    %385 = vmatprep.subr.mxu0 0.0
    %386 = vmatpush1.msra.mxu0 %v59
    %387 = vmatprep.subr.mxu0 0.0
    %388 = vmatpush1.msra.mxu0 %v60
    %389 = vmatprep.subr.mxu0 0.0
    %390 = vmatpush1.msra.mxu0 %v61
    %391 = vmatprep.subr.mxu0 0.0
    %392 = vmatpush1.msra.mxu0 %v62
    %393 = vmatprep.subr.mxu0 0.0
    %394 = vmatpush1.msra.mxu0 0.0
    %395 = vmatprep.subr.mxu0 0.0
    %396 = vmatpush1.msra.mxu0 0.0
    %397 = vmatprep.subr.mxu0 0.0
    %398 = vmatpush1.msra.mxu0 0.0
    %399 = vmatprep.subr.mxu0 0.0
    %400 = vmatpush1.msra.mxu0 0.0
    %401 = vmatprep.subr.mxu0 0.0
    %402 = vmatpush1.msra.mxu0 0.0
    %403 = vmatprep.subr.mxu0 0.0
    %404 = vmatpush1.msra.mxu0 0.0
    %405 = vmatprep.subr.mxu0 0.0
    %406 = vmatpush1.msra.mxu0 0.0
    %407 = vmatprep.subr.mxu0 0.0
    %408 = vmatpush1.msra.mxu0 0.0
    %409 = vmatprep.subr.mxu0 0.0
    %410 = vmatpush1.msra.mxu0 0.0
    %411 = vmatprep.subr.mxu0 0.0
    %412 = vmatpush1.msra.mxu0 0.0
    %413 = vmatprep.subr.mxu0 0.0
    %414 = vmatpush1.msra.mxu0 0.0
    %415 = vmatprep.subr.mxu0 0.0
    %416 = vmatpush1.msra.mxu0 0.0
    %417 = vmatprep.subr.mxu0 0.0
    %418 = vmatpush1.msra.mxu0 0.0
    %419 = vmatprep.subr.mxu0 0.0
    %420 = vmatpush1.msra.mxu0 0.0
    %421 = vmatprep.subr.mxu0 0.0
    %422 = vmatpush1.msra.mxu0 0.0
    %423 = vmatprep.subr.mxu0 0.0
    %424 = vmatpush1.msra.mxu0 0.0
    %425 = vmatprep.subr.mxu0 0.0
    %426 = vmatpush1.msra.mxu0 0.0
    %427 = vmatprep.subr.mxu0 0.0
    %428 = vmatpush1.msra.mxu0 0.0
    %429 = vmatprep.subr.mxu0 0.0
    %430 = vmatpush1.msra.mxu0 0.0
    %431 = vmatprep.subr.mxu0 0.0
    %432 = vmatpush1.msra.mxu0 0.0
    %433 = vmatprep.subr.mxu0 0.0
    %434 = vmatpush1.msra.mxu0 0.0
    %435 = vmatprep.subr.mxu0 0.0
    %436 = vmatpush1.msra.mxu0 0.0
    %437 = vmatprep.subr.mxu0 0.0
    %438 = vmatpush1.msra.mxu0 0.0
    %439 = vmatprep.subr.mxu0 0.0
    %440 = vmatpush1.msra.mxu0 0.0
    %441 = vmatprep.subr.mxu0 0.0
    %442 = vmatpush1.msra.mxu0 0.0
    %443 = vmatprep.subr.mxu0 0.0
    %444 = vmatpush1.msra.mxu0 0.0
    %445 = vmatprep.subr.mxu0 0.0
    %446 = vmatpush1.msra.mxu0 0.0
    %447 = vmatprep.subr.mxu0 0.0
    %448 = vmatpush1.msra.mxu0 0.0
    %449 = vmatprep.mubr.f32.mxu0 0.0
    %450 = vmatmul.mubr.f32.gmra.mrb[0].mxu0 %v383
    %v451 = vpop.f32.mrb[0].mxu0
    %v452 = vadd.f32 0.0, %v451
    %v453 = vpop.f32.mrb[0].mxu0
    %454 = vdwg.mxu0
    %v455 = vadd.f32 %v381, %v452
    %v456 = vtanh.pop %v455
    %s457 = scalar_lea.vmem [#allocation2], 24
    %v458 = vld [vmem:[%s457] sm:$0xf]
    %v459 = vunpack.c.l.bf16 %v458
    %v461 = vsel %vm69, %v456, 0
    %463 = vmatprep.subr.mxu0 0.0
    %464 = vmatpush1.msra.mxu0 %v59
    %465 = vmatprep.subr.mxu0 0.0
    %466 = vmatpush1.msra.mxu0 %v60
    %467 = vmatprep.subr.mxu0 0.0
    %468 = vmatpush1.msra.mxu0 %v61
    %469 = vmatprep.subr.mxu0 0.0
    %470 = vmatpush1.msra.mxu0 %v62
    %471 = vmatprep.subr.mxu0 0.0
    %472 = vmatpush1.msra.mxu0 0.0
    %473 = vmatprep.subr.mxu0 0.0
    %474 = vmatpush1.msra.mxu0 0.0
    %475 = vmatprep.subr.mxu0 0.0
    %476 = vmatpush1.msra.mxu0 0.0
    %477 = vmatprep.subr.mxu0 0.0
    %478 = vmatpush1.msra.mxu0 0.0
    %479 = vmatprep.subr.mxu0 0.0
    %480 = vmatpush1.msra.mxu0 0.0
    %481 = vmatprep.subr.mxu0 0.0
    %482 = vmatpush1.msra.mxu0 0.0
    %483 = vmatprep.subr.mxu0 0.0
    %484 = vmatpush1.msra.mxu0 0.0
    %485 = vmatprep.subr.mxu0 0.0
    %486 = vmatpush1.msra.mxu0 0.0
    %487 = vmatprep.subr.mxu0 0.0
    %488 = vmatpush1.msra.mxu0 0.0
    %489 = vmatprep.subr.mxu0 0.0
    %490 = vmatpush1.msra.mxu0 0.0
    %491 = vmatprep.subr.mxu0 0.0
    %492 = vmatpush1.msra.mxu0 0.0
    %493 = vmatprep.subr.mxu0 0.0
    %494 = vmatpush1.msra.mxu0 0.0
    %495 = vmatprep.subr.mxu0 0.0
    %496 = vmatpush1.msra.mxu0 0.0
    %497 = vmatprep.subr.mxu0 0.0
    %498 = vmatpush1.msra.mxu0 0.0
    %499 = vmatprep.subr.mxu0 0.0
    %500 = vmatpush1.msra.mxu0 0.0
    %501 = vmatprep.subr.mxu0 0.0
    %502 = vmatpush1.msra.mxu0 0.0
    %503 = vmatprep.subr.mxu0 0.0
    %504 = vmatpush1.msra.mxu0 0.0
    %505 = vmatprep.subr.mxu0 0.0
    %506 = vmatpush1.msra.mxu0 0.0
    %507 = vmatprep.subr.mxu0 0.0
    %508 = vmatpush1.msra.mxu0 0.0
    %509 = vmatprep.subr.mxu0 0.0
    %510 = vmatpush1.msra.mxu0 0.0
    %511 = vmatprep.subr.mxu0 0.0
    %512 = vmatpush1.msra.mxu0 0.0
    %513 = vmatprep.subr.mxu0 0.0
    %514 = vmatpush1.msra.mxu0 0.0
    %515 = vmatprep.subr.mxu0 0.0
    %516 = vmatpush1.msra.mxu0 0.0
    %517 = vmatprep.subr.mxu0 0.0
    %518 = vmatpush1.msra.mxu0 0.0
    %519 = vmatprep.subr.mxu0 0.0
    %520 = vmatpush1.msra.mxu0 0.0
    %521 = vmatprep.subr.mxu0 0.0
    %522 = vmatpush1.msra.mxu0 0.0
    %523 = vmatprep.subr.mxu0 0.0
    %524 = vmatpush1.msra.mxu0 0.0
    %525 = vmatprep.subr.mxu0 0.0
    %526 = vmatpush1.msra.mxu0 0.0
    %527 = vmatprep.mubr.f32.mxu0 0.0
    %528 = vmatmul.mubr.f32.gmra.mrb[0].mxu0 %v461
    %v529 = vpop.f32.mrb[0].mxu0
    %v530 = vadd.f32 0.0, %v529
    %v531 = vpop.f32.mrb[0].mxu0
    %532 = vdwg.mxu0
    %v533 = vadd.f32 %v459, %v530
    %v534 = vtanh.pop %v533
    %s535 = scalar_lea.vmem [#allocation2], 28
    %v536 = vld [vmem:[%s535] sm:$0xf]
    %v537 = vunpack.c.l.bf16 %v536
    %v539 = vsel %vm69, %v534, 0
    %541 = vmatprep.subr.mxu0 0.0
    %542 = vmatpush1.msra.mxu0 %v59
    %543 = vmatprep.subr.mxu0 0.0
    %544 = vmatpush1.msra.mxu0 %v60
    %545 = vmatprep.subr.mxu0 0.0
    %546 = vmatpush1.msra.mxu0 %v61
    %547 = vmatprep.subr.mxu0 0.0
    %548 = vmatpush1.msra.mxu0 %v62
    %549 = vmatprep.subr.mxu0 0.0
    %550 = vmatpush1.msra.mxu0 0.0
    %551 = vmatprep.subr.mxu0 0.0
    %552 = vmatpush1.msra.mxu0 0.0
    %553 = vmatprep.subr.mxu0 0.0
    %554 = vmatpush1.msra.mxu0 0.0
    %555 = vmatprep.subr.mxu0 0.0
    %556 = vmatpush1.msra.mxu0 0.0
    %557 = vmatprep.subr.mxu0 0.0
    %558 = vmatpush1.msra.mxu0 0.0
    %559 = vmatprep.subr.mxu0 0.0
    %560 = vmatpush1.msra.mxu0 0.0
    %561 = vmatprep.subr.mxu0 0.0
    %562 = vmatpush1.msra.mxu0 0.0
    %563 = vmatprep.subr.mxu0 0.0
    %564 = vmatpush1.msra.mxu0 0.0
    %565 = vmatprep.subr.mxu0 0.0
    %566 = vmatpush1.msra.mxu0 0.0
    %567 = vmatprep.subr.mxu0 0.0
    %568 = vmatpush1.msra.mxu0 0.0
    %569 = vmatprep.subr.mxu0 0.0
    %570 = vmatpush1.msra.mxu0 0.0
    %571 = vmatprep.subr.mxu0 0.0
    %572 = vmatpush1.msra.mxu0 0.0
    %573 = vmatprep.subr.mxu0 0.0
    %574 = vmatpush1.msra.mxu0 0.0
    %575 = vmatprep.subr.mxu0 0.0
    %576 = vmatpush1.msra.mxu0 0.0
    %577 = vmatprep.subr.mxu0 0.0
    %578 = vmatpush1.msra.mxu0 0.0
    %579 = vmatprep.subr.mxu0 0.0
    %580 = vmatpush1.msra.mxu0 0.0
    %581 = vmatprep.subr.mxu0 0.0
    %582 = vmatpush1.msra.mxu0 0.0
    %583 = vmatprep.subr.mxu0 0.0
    %584 = vmatpush1.msra.mxu0 0.0
    %585 = vmatprep.subr.mxu0 0.0
    %586 = vmatpush1.msra.mxu0 0.0
    %587 = vmatprep.subr.mxu0 0.0
    %588 = vmatpush1.msra.mxu0 0.0
    %589 = vmatprep.subr.mxu0 0.0
    %590 = vmatpush1.msra.mxu0 0.0
    %591 = vmatprep.subr.mxu0 0.0
    %592 = vmatpush1.msra.mxu0 0.0
    %593 = vmatprep.subr.mxu0 0.0
    %594 = vmatpush1.msra.mxu0 0.0
    %595 = vmatprep.subr.mxu0 0.0
    %596 = vmatpush1.msra.mxu0 0.0
    %597 = vmatprep.subr.mxu0 0.0
    %598 = vmatpush1.msra.mxu0 0.0
    %599 = vmatprep.subr.mxu0 0.0
    %600 = vmatpush1.msra.mxu0 0.0
    %601 = vmatprep.subr.mxu0 0.0
    %602 = vmatpush1.msra.mxu0 0.0
    %603 = vmatprep.subr.mxu0 0.0
    %604 = vmatpush1.msra.mxu0 0.0
    %605 = vmatprep.mubr.f32.mxu0 0.0
    %606 = vmatmul.mubr.f32.gmra.mrb[0].mxu0 %v539
    %v607 = vpop.f32.mrb[0].mxu0
    %v608 = vadd.f32 0.0, %v607
    %v609 = vpop.f32.mrb[0].mxu0
    %610 = vdwg.mxu0
    %v611 = vadd.f32 %v537, %v608
    %v612 = vtanh.pop %v611
    %v613 = vld [vmem:[#allocation7] sm:$0xff]
    %v614 = vld [vmem:[#allocation7 + $0x8] sm:$0xff]
    %v615 = vld [vmem:[#allocation7 + $0x10] sm:$0xff]
    %v616 = vld [vmem:[#allocation7 + $0x18] sm:$0xff]
    %v617 = vld [vmem:[%s3] sm:$0x1]
    %v619 = vlaneseq
    %v620 = vshrl.u32 %v619, 7
    %v621 = vsub.s32 0, %v620
    %v622 = vrot.slane %v617, %v621
    %v625 = vsel %vm69, %v612, 0
    %627 = vmatprep.subr.mxu0 0.0
    %628 = vmatpush1.msra.mxu0 %v613
    %629 = vmatprep.subr.mxu0 0.0
    %630 = vmatpush1.msra.mxu0 %v614
    %631 = vmatprep.subr.mxu0 0.0
    %632 = vmatpush1.msra.mxu0 %v615
    %633 = vmatprep.subr.mxu0 0.0
    %634 = vmatpush1.msra.mxu0 %v616
    %635 = vmatprep.subr.mxu0 0.0
    %636 = vmatpush1.msra.mxu0 0.0
    %637 = vmatprep.subr.mxu0 0.0
    %638 = vmatpush1.msra.mxu0 0.0
    %639 = vmatprep.subr.mxu0 0.0
    %640 = vmatpush1.msra.mxu0 0.0
    %641 = vmatprep.subr.mxu0 0.0
    %642 = vmatpush1.msra.mxu0 0.0
    %643 = vmatprep.subr.mxu0 0.0
    %644 = vmatpush1.msra.mxu0 0.0
    %645 = vmatprep.subr.mxu0 0.0
    %646 = vmatpush1.msra.mxu0 0.0
    %647 = vmatprep.subr.mxu0 0.0
    %648 = vmatpush1.msra.mxu0 0.0
    %649 = vmatprep.subr.mxu0 0.0
    %650 = vmatpush1.msra.mxu0 0.0
    %651 = vmatprep.subr.mxu0 0.0
    %652 = vmatpush1.msra.mxu0 0.0
    %653 = vmatprep.subr.mxu0 0.0
    %654 = vmatpush1.msra.mxu0 0.0
    %655 = vmatprep.subr.mxu0 0.0
    %656 = vmatpush1.msra.mxu0 0.0
    %657 = vmatprep.subr.mxu0 0.0
    %658 = vmatpush1.msra.mxu0 0.0
    %659 = vmatprep.subr.mxu0 0.0
    %660 = vmatpush1.msra.mxu0 0.0
    %661 = vmatprep.subr.mxu0 0.0
    %662 = vmatpush1.msra.mxu0 0.0
    %663 = vmatprep.subr.mxu0 0.0
    %664 = vmatpush1.msra.mxu0 0.0
    %665 = vmatprep.subr.mxu0 0.0
    %666 = vmatpush1.msra.mxu0 0.0
    %667 = vmatprep.subr.mxu0 0.0
    %668 = vmatpush1.msra.mxu0 0.0
    %669 = vmatprep.subr.mxu0 0.0
    %670 = vmatpush1.msra.mxu0 0.0
    %671 = vmatprep.subr.mxu0 0.0
    %672 = vmatpush1.msra.mxu0 0.0
    %673 = vmatprep.subr.mxu0 0.0
    %674 = vmatpush1.msra.mxu0 0.0
    %675 = vmatprep.subr.mxu0 0.0
    %676 = vmatpush1.msra.mxu0 0.0
    %677 = vmatprep.subr.mxu0 0.0
    %678 = vmatpush1.msra.mxu0 0.0
    %679 = vmatprep.subr.mxu0 0.0
    %680 = vmatpush1.msra.mxu0 0.0
    %681 = vmatprep.subr.mxu0 0.0
    %682 = vmatpush1.msra.mxu0 0.0
    %683 = vmatprep.subr.mxu0 0.0
    %684 = vmatpush1.msra.mxu0 0.0
    %685 = vmatprep.subr.mxu0 0.0
    %686 = vmatpush1.msra.mxu0 0.0
    %687 = vmatprep.subr.mxu0 0.0
    %688 = vmatpush1.msra.mxu0 0.0
    %689 = vmatprep.subr.mxu0 0.0
    %690 = vmatpush1.msra.mxu0 0.0
    %691 = vmatprep.mubr.f32.mxu0 0.0
    %692 = vmatmul.mubr.f32.gmra.mrb[0].mxu0 %v625
    %v693 = vpop.f32.mrb[0].mxu0
    %v694 = vadd.f32 %v622, %v693
    %v695 = vpop.f32.mrb[0].mxu0
    %696 = vdwg.mxu0
    %697 = vmax.xlane.f32.xlu0 %v694
    %v698 = vpop.xlane.xlu0 %697
    %v699 = vsub.f32 %v694, %v698
    %v700 = vmul.f32 %v699, 1.442695
    %v701 = vpow.pop %v700
    %702 = vadd.xlane.f32.xlu0 %v701
    %v703 = vpop.xlane.xlu0 %702
    %v704 = vrcp.pop %v703
    %v705 = vmul.f32 %v701, %v704
    %706 = vst [vmem:[#allocation8] sm:$0xff] %v705
    // Predicated region
    $region30: #{tpu_custom_call.1} parent=1 // pred_check
      _
    $region31: #{tpu_custom_call.1} parent=1 // pred_check_branch
      %708 = sbr.rel (0) target = $region33
    $region32: #{tpu_custom_call.1} parent=1 // pred_region
      %s710 = ssub.s32 128, 128
      %711 = vsyncadd [#allocation4], %s710
      %s713 = sshll.u32 [#allocation8], 4
      %s714 = int_to_ptr.vmem [resolvable:$true] %s713
      %716 = dma.vmem_to_hbm [thread:$0]  %s714, 128, %s4, [#allocation4]
    $region33: #{tpu_custom_call.1} parent=1 // pred_fallthru
      _
    // Predicated region
    $region34: #{tpu_custom_call.1} parent=1 // pred_check
      _
    $region35: #{tpu_custom_call.1} parent=1 // pred_check_branch
      %718 = sbr.rel (0) target = $region37
    $region36: #{tpu_custom_call.1} parent=1 // pred_region
      %719 = dma.done [#allocation4], 128
    $region37: #{tpu_custom_call.1} parent=1 // pred_fallthru
      _
    %720 = vsyncpa [#allocation3], 1
    %721 = vsyncpa [#allocation6], 1
    %722 = vsyncpa [#allocation4], 1

</llo_original>
